<compile_context>
chip_gen: v5e
topology: v5e:2x2
jax: 0.10.0
libtpu: 0.0.40
codegen_flags: <defaults>
</compile_context>

<pallas_src>
import functools

import jax
import jax.numpy as jnp
from jax.experimental import pallas as pl
from jax.experimental.pallas import tpu as pltpu


def _round_up(x: int, m: int) -> int:
    return ((x + m - 1) // m) * m


def _qnet_kernel(s_ref, w_ref, b_ref, out_ref, *, state_dim):
    """One batch tile of QNet: Linear->ReLU (x3) -> Linear, all padded to P lanes.

    Zero-padding invariant: every weight block is zero outside its logical
    (in, out) window and every bias row is zero outside its logical width, so
    the padded lanes of each activation stay exactly zero through the chain.
    """
    f32 = jnp.float32
    s = s_ref[...]                                   # (TB, state_dim)

    # Layer 1: (TB, state_dim) @ (state_dim, P)
    w1 = w_ref[0][:state_dim, :]
    h = jnp.dot(s, w1, preferred_element_type=f32) + b_ref[0:1, :]
    h = jnp.maximum(h, 0.0)

    # Layer 2: (TB, P) @ (P, P)   (rows >= mid_dim of W2 are zero)
    h = jnp.dot(h, w_ref[1], preferred_element_type=f32) + b_ref[1:2, :]
    h = jnp.maximum(h, 0.0)

    # Layer 3
    h = jnp.dot(h, w_ref[2], preferred_element_type=f32) + b_ref[2:3, :]
    h = jnp.maximum(h, 0.0)

    # Layer 4 (no activation); output lanes >= action_dim are zero.
    out_ref[...] = jnp.dot(h, w_ref[3], preferred_element_type=f32) + b_ref[3:4, :]


def init_params(key, state_dim, action_dim, mid_dim):
    """Raw parameters matching the PyTorch QNet (orthogonal init, gain=sqrt(2))."""
    ks = jax.random.split(key, 4)
    ortho = jax.nn.initializers.orthogonal(scale=float(jnp.sqrt(2.0)))
    params = {
        'w1': ortho(ks[0], (state_dim, mid_dim), jnp.float32),
        'b1': jnp.zeros((mid_dim,), jnp.float32),
        'w2': ortho(ks[1], (mid_dim, mid_dim), jnp.float32),
        'b2': jnp.zeros((mid_dim,), jnp.float32),
        'w3': ortho(ks[2], (mid_dim, mid_dim), jnp.float32),
        'b3': jnp.zeros((mid_dim,), jnp.float32),
        'w4': ortho(ks[3], (mid_dim, action_dim), jnp.float32),
        'b4': jnp.zeros((action_dim,), jnp.float32),
    }
    return params


def pack_params(params, state_dim, action_dim, mid_dim):
    """One-time packing of all weights/biases into two lane-padded slabs."""
    P = _round_up(max(state_dim, mid_dim, action_dim), 128)

    w_slab = jnp.zeros((4, P, P), jnp.float32)
    w_slab = w_slab.at[0, :state_dim, :mid_dim].set(params['w1'])
    w_slab = w_slab.at[1, :mid_dim, :mid_dim].set(params['w2'])
    w_slab = w_slab.at[2, :mid_dim, :mid_dim].set(params['w3'])
    w_slab = w_slab.at[3, :mid_dim, :action_dim].set(params['w4'])

    b_slab = jnp.zeros((8, P), jnp.float32)          # 8 sublanes (4 used)
    b_slab = b_slab.at[0, :mid_dim].set(params['b1'])
    b_slab = b_slab.at[1, :mid_dim].set(params['b2'])
    b_slab = b_slab.at[2, :mid_dim].set(params['b3'])
    b_slab = b_slab.at[3, :action_dim].set(params['b4'])

    return {'w': w_slab, 'b': b_slab, 'pad': P,
            'state_dim': state_dim, 'action_dim': action_dim, 'mid_dim': mid_dim}


def qnet_forward(s, packed, *, batch_tile=256):
    """Pallas-call wrapper: batch-tiled grid, VMEM-resident packed weights."""
    w_slab, b_slab = packed['w'], packed['b']
    P = packed['pad']
    state_dim = packed['state_dim']
    action_dim = packed['action_dim']
    mid_dim = packed['mid_dim']

    B = s.shape[0]
    Bp = _round_up(B, 8)
    TB = min(batch_tile, Bp)                 # batch tile, multiple of 8
    Bp = _round_up(Bp, TB)                   # pad batch to a whole number of tiles
    if Bp != B:
        s_in = jnp.zeros((Bp, state_dim), s.dtype).at[:B, :].set(s)
    else:
        s_in = s

    grid = (Bp // TB,)

    flops = 2 * Bp * (state_dim * mid_dim + 2 * mid_dim * mid_dim
                      + mid_dim * action_dim)
    bytes_accessed = 4 * (s_in.size + w_slab.size + b_slab.size + Bp * P)

    out = pl.pallas_call(
        functools.partial(_qnet_kernel, state_dim=state_dim),
        out_shape=jax.ShapeDtypeStruct((Bp, P), jnp.float32),
        grid_spec=pltpu.PrefetchScalarGridSpec(
            num_scalar_prefetch=0,
            grid=grid,
            in_specs=[
                pl.BlockSpec((TB, state_dim), lambda i: (i, 0)),   # state tile
                pl.BlockSpec((4, P, P), lambda i: (0, 0, 0)),      # weights (resident)
                pl.BlockSpec((8, P), lambda i: (0, 0)),            # biases  (resident)
            ],
            out_specs=pl.BlockSpec((TB, P), lambda i: (i, 0)),     # lane-dense output
        ),
        compiler_params=pltpu.CompilerParams(
            dimension_semantics=("parallel",)),
        cost_estimate=pl.CostEstimate(flops=flops, transcendentals=0,
                                      bytes_accessed=bytes_accessed),
    )(s_in, w_slab, b_slab)

    return out[:B, :action_dim]


def reference_forward(s, params):
    """Pure-JAX reference mirroring the PyTorch QNet forward (vector-state path)."""
    h = jnp.maximum(s @ params['w1'] + params['b1'], 0.0)
    h = jnp.maximum(h @ params['w2'] + params['b2'], 0.0)
    h = jnp.maximum(h @ params['w3'] + params['b3'], 0.0)
    return h @ params['w4'] + params['b4']


if __name__ == "__main__":
    state_dim, action_dim, mid_dim = 16, 4, 32
    batch = 8

    key = jax.random.PRNGKey(0)
    k_s, k_p, k_s2 = jax.random.split(key, 3)
    s = jax.random.normal(k_s, (batch, state_dim), jnp.float32)

    params = init_params(k_p, state_dim, action_dim, mid_dim)
    packed = pack_params(params, state_dim, action_dim, mid_dim)   # one-time prep

    # TODO(synk): the image-state branch (ImageConv, len(state_dim) > 1) is not
    # implemented; only the vector-state MLP path of QNet is covered here.

    out = jax.block_until_ready(qnet_forward(s, packed))
    ref = reference_forward(s, params)
    assert out.shape == (batch, action_dim)
    assert jnp.allclose(out, ref, atol=1e-5, rtol=1e-5)

    # Exercise the batch-padding path (B not a multiple of the batch tile).
    s2 = jax.random.normal(k_s2, (20, state_dim), jnp.float32)
    out2 = jax.block_until_ready(qnet_forward(s2, packed))
    ref2 = reference_forward(s2, params)
    assert out2.shape == (20, action_dim)
    assert jnp.allclose(out2, ref2, atol=1e-5, rtol=1e-5)

    print("KERNEL_OK")
</pallas_src>

<mosaic_0001>
module attributes {stable_mosaic.version = 11 : i64} {
  func.func @_qnet_kernel(%arg0: i32, %arg1: memref<8x16xf32, #tpu.memory_space<vmem>>, %arg2: memref<4x128x128xf32, #tpu.memory_space<vmem>>, %arg3: memref<8x128xf32, #tpu.memory_space<vmem>>, %arg4: memref<8x128xf32, #tpu.memory_space<vmem>>) attributes {dimension_semantics = [#tpu.dimension_semantics<parallel>], iteration_bounds = array<i64: 1>, scalar_prefetch = 0 : i64, scratch_operands = 0 : i64, tpu.core_type = #tpu.core_type<tc>, window_params = [{transform_indices = @transform_0, window_bounds = array<i64: 8, 16>}, {pipeline_mode = #tpu.pipeline_mode<synchronous>, transform_indices = @transform_1, window_bounds = array<i64: 4, 128, 128>}, {pipeline_mode = #tpu.pipeline_mode<synchronous>, transform_indices = @transform_2, window_bounds = array<i64: 8, 128>}, {transform_indices = @transform_3, window_bounds = array<i64: 8, 128>}]} {
    %c0 = arith.constant 0 : index
    %c0_0 = arith.constant 0 : index
    %0 = vector.load %arg1[%c0, %c0_0] : memref<8x16xf32, #tpu.memory_space<vmem>>, vector<8x16xf32>
    %c0_1 = arith.constant 0 : index
    %c0_2 = arith.constant 0 : index
    %c0_3 = arith.constant 0 : index
    %1 = vector.load %arg2[%c0_1, %c0_2, %c0_3] : memref<4x128x128xf32, #tpu.memory_space<vmem>>, vector<1x128x128xf32>
    %2 = vector.shape_cast %1 : vector<1x128x128xf32> to vector<128x128xf32>
    %3 = vector.extract_strided_slice %2 {offsets = [0, 0], sizes = [16, 128], strides = [1, 1]} : vector<128x128xf32> to vector<16x128xf32>
    %cst = arith.constant dense<0.000000e+00> : vector<8x128xf32>
    %4 = tpu.matmul %0, %3, %cst {dimension_numbers = #tpu.dot_dimension_numbers<[1], [0], [0], [1], [0, 0, 1, 1], [], []>} : vector<8x16xf32>, vector<16x128xf32>, vector<8x128xf32> -> vector<8x128xf32>
    %c0_4 = arith.constant 0 : index
    %c0_5 = arith.constant 0 : index
    %5 = vector.load %arg3[%c0_4, %c0_5] : memref<8x128xf32, #tpu.memory_space<vmem>>, vector<1x128xf32>
    %6 = vector.broadcast %5 : vector<1x128xf32> to vector<8x128xf32>
    %7 = arith.addf %4, %6 : vector<8x128xf32>
    %cst_6 = arith.constant 0.000000e+00 : f32
    %8 = vector.broadcast %cst_6 : f32 to vector<8x128xf32>
    %9 = arith.maximumf %7, %8 : vector<8x128xf32>
    %c1 = arith.constant 1 : index
    %c0_7 = arith.constant 0 : index
    %c0_8 = arith.constant 0 : index
    %10 = vector.load %arg2[%c1, %c0_7, %c0_8] : memref<4x128x128xf32, #tpu.memory_space<vmem>>, vector<1x128x128xf32>
    %11 = vector.shape_cast %10 : vector<1x128x128xf32> to vector<128x128xf32>
    %cst_9 = arith.constant dense<0.000000e+00> : vector<8x128xf32>
    %12 = tpu.matmul %9, %11, %cst_9 {dimension_numbers = #tpu.dot_dimension_numbers<[1], [0], [0], [1], [0, 0, 1, 1], [], []>} : vector<8x128xf32>, vector<128x128xf32>, vector<8x128xf32> -> vector<8x128xf32>
    %c1_10 = arith.constant 1 : index
    %c0_11 = arith.constant 0 : index
    %13 = vector.load %arg3[%c1_10, %c0_11] : memref<8x128xf32, #tpu.memory_space<vmem>>, vector<1x128xf32>
    %14 = vector.broadcast %13 : vector<1x128xf32> to vector<8x128xf32>
    %15 = arith.addf %12, %14 : vector<8x128xf32>
    %cst_12 = arith.constant 0.000000e+00 : f32
    %16 = vector.broadcast %cst_12 : f32 to vector<8x128xf32>
    %17 = arith.maximumf %15, %16 : vector<8x128xf32>
    %c2 = arith.constant 2 : index
    %c0_13 = arith.constant 0 : index
    %c0_14 = arith.constant 0 : index
    %18 = vector.load %arg2[%c2, %c0_13, %c0_14] : memref<4x128x128xf32, #tpu.memory_space<vmem>>, vector<1x128x128xf32>
    %19 = vector.shape_cast %18 : vector<1x128x128xf32> to vector<128x128xf32>
    %cst_15 = arith.constant dense<0.000000e+00> : vector<8x128xf32>
    %20 = tpu.matmul %17, %19, %cst_15 {dimension_numbers = #tpu.dot_dimension_numbers<[1], [0], [0], [1], [0, 0, 1, 1], [], []>} : vector<8x128xf32>, vector<128x128xf32>, vector<8x128xf32> -> vector<8x128xf32>
    %c2_16 = arith.constant 2 : index
    %c0_17 = arith.constant 0 : index
    %21 = vector.load %arg3[%c2_16, %c0_17] : memref<8x128xf32, #tpu.memory_space<vmem>>, vector<1x128xf32>
    %22 = vector.broadcast %21 : vector<1x128xf32> to vector<8x128xf32>
    %23 = arith.addf %20, %22 : vector<8x128xf32>
    %cst_18 = arith.constant 0.000000e+00 : f32
    %24 = vector.broadcast %cst_18 : f32 to vector<8x128xf32>
    %25 = arith.maximumf %23, %24 : vector<8x128xf32>
    %c3 = arith.constant 3 : index
    %c0_19 = arith.constant 0 : index
    %c0_20 = arith.constant 0 : index
    %26 = vector.load %arg2[%c3, %c0_19, %c0_20] : memref<4x128x128xf32, #tpu.memory_space<vmem>>, vector<1x128x128xf32>
    %27 = vector.shape_cast %26 : vector<1x128x128xf32> to vector<128x128xf32>
    %cst_21 = arith.constant dense<0.000000e+00> : vector<8x128xf32>
    %28 = tpu.matmul %25, %27, %cst_21 {dimension_numbers = #tpu.dot_dimension_numbers<[1], [0], [0], [1], [0, 0, 1, 1], [], []>} : vector<8x128xf32>, vector<128x128xf32>, vector<8x128xf32> -> vector<8x128xf32>
    %c3_22 = arith.constant 3 : index
    %c0_23 = arith.constant 0 : index
    %29 = vector.load %arg3[%c3_22, %c0_23] : memref<8x128xf32, #tpu.memory_space<vmem>>, vector<1x128xf32>
    %30 = vector.broadcast %29 : vector<1x128xf32> to vector<8x128xf32>
    %31 = arith.addf %28, %30 : vector<8x128xf32>
    %c0_24 = arith.constant 0 : index
    %c0_25 = arith.constant 0 : index
    %32 = vector.load %arg4[%c0_24, %c0_25] : memref<8x128xf32, #tpu.memory_space<vmem>>, vector<8x128xf32>
    tpu.vector_store %arg4[%c0_24, %c0_25], %31 {strides = array<i32>} : memref<8x128xf32, #tpu.memory_space<vmem>>, vector<8x128xf32>,
    return
  }
  func.func @transform_0(%arg0: i32) -> (i32, i32) {
    %c0_i32 = arith.constant 0 : i32
    %c0_i32_0 = arith.constant 0 : i32
    return %arg0, %c0_i32 : i32, i32
  }
  func.func @transform_1(%arg0: i32) -> (i32, i32, i32) {
    %c0_i32 = arith.constant 0 : i32
    %c0_i32_0 = arith.constant 0 : i32
    %c0_i32_1 = arith.constant 0 : i32
    %c0_i32_2 = arith.constant 0 : i32
    return %c0_i32, %c0_i32_0, %c0_i32_1 : i32, i32, i32
  }
  func.func @transform_2(%arg0: i32) -> (i32, i32) {
    %c0_i32 = arith.constant 0 : i32
    %c0_i32_0 = arith.constant 0 : i32
    %c0_i32_1 = arith.constant 0 : i32
    return %c0_i32, %c0_i32_0 : i32, i32
  }
  func.func @transform_3(%arg0: i32) -> (i32, i32) {
    %c0_i32 = arith.constant 0 : i32
    %c0_i32_0 = arith.constant 0 : i32
    return %arg0, %c0_i32 : i32, i32
  }
}

</mosaic_0001>

<llo_original>
// kernel: tpu_custom_call.1
$region0: #{tpu_custom_call.1}
  #allocation0 [shape = 'u32[]', space=smem, size = 0x4, offset = 0x4, fixed_abs, tag = 'smem constant byte address 0x4 - core index']
  #allocation1 [shape = 'u32[72,128]{1,0:T(1,128)}', space=vmem, size = 0x9000, scoped, tag = 'internal scratch']
  %s0 = inlined_call_operand.hbm [shape: f32[8,16], index: 0, kind: input, shape index: {}]
  %s1 = inlined_call_operand.hbm [shape: f32[4,128,128], index: 1, kind: input, shape index: {}]
  %s2 = inlined_call_operand.hbm [shape: f32[8,128], index: 2, kind: input, shape index: {}]
  %s3 = inlined_call_operand.hbm [shape: f32[8,128], index: 3, kind: output, shape index: {}]
  %s4 = sld [smem:[#allocation0]]
  $region34: #{tpu_custom_call.1} parent=0
    _
  %s6 = ssub.s32 1, %s4
  %s7 = scalar_select 0, %s6, %s4
  $region1: #{tpu_custom_call.1} parent=0
    #allocation2 [shape = 'u8[4096]{0}', space=vmem, size = 0x1000, scoped, tag = 'input window, operand 0, single buffered']
    #allocation3 [shape = 's32[1]{0}', space=sflag, size = 0x4, scoped, tag = 'scoped memory for tpu_custom_call.1']
    #allocation4 [shape = 's32[1]{0}', space=sflag, size = 0x4, scoped, tag = 'scoped memory for tpu_custom_call.1']
    #allocation5 [shape = 'u8[262144]{0}', space=vmem, size = 0x40000, scoped, tag = 'input window, operand 1, single buffered']
    #allocation6 [shape = 's32[1]{0}', space=sflag, size = 0x4, scoped, tag = 'scoped memory for tpu_custom_call.1']
    #allocation7 [shape = 'u8[4096]{0}', space=vmem, size = 0x1000, scoped, tag = 'input window, operand 2, single buffered']
    #allocation8 [shape = 'u8[4096]{0}', space=vmem, size = 0x1000, scoped, tag = 'output window, operand 0, single buffered']
    %8 = vsyncpa [#allocation3], 0
    %9 = vsyncpa [#allocation6], 0
    %10 = vsyncpa [#allocation4], 0
    // Predicated region
    $region2: #{tpu_custom_call.1} parent=1 // pred_check
      _
    $region3: #{tpu_custom_call.1} parent=1 // pred_check_branch
      %12 = sbr.rel (0) target = $region5
    $region4: #{tpu_custom_call.1} parent=1 // pred_region
      %14 = vsyncadd [#allocation3], 0
      %s16 = sshll.u32 %s0, 4
      %s17 = int_to_ptr.hbm [resolvable:$true] %s16
      %s18 = sshll.u32 [#allocation2], 4
      %s19 = int_to_ptr.vmem [resolvable:$true] %s18
      %21 = dma.hbm_to_vmem [thread:$0]  %s17, 128, %s19, [#allocation3]
    $region5: #{tpu_custom_call.1} parent=1 // pred_fallthru
      _
    // Predicated region
    $region6: #{tpu_custom_call.1} parent=1 // pred_check
      _
    $region7: #{tpu_custom_call.1} parent=1 // pred_check_branch
      %23 = sbr.rel (0) target = $region9
    $region8: #{tpu_custom_call.1} parent=1 // pred_region
      %25 = vsyncadd [#allocation6], 0
      %s26 = sshll.u32 %s1, 4
      %s27 = int_to_ptr.hbm [resolvable:$true] %s26
      %s28 = sshll.u32 [#allocation5], 4
      %s29 = int_to_ptr.vmem [resolvable:$true] %s28
      %34 = dma.hbm_to_vmem [thread:$0]  %s27, 8192, %s29, [#allocation6], 128, 128, 8
    $region9: #{tpu_custom_call.1} parent=1 // pred_fallthru
      _
    // Predicated region
    $region10: #{tpu_custom_call.1} parent=1 // pred_check
      _
    $region11: #{tpu_custom_call.1} parent=1 // pred_check_branch
      %36 = sbr.rel (0) target = $region13
    $region12: #{tpu_custom_call.1} parent=1 // pred_region
      %38 = vsyncadd [#allocation6], 0
      %s40 = sshll.u32 %s2, 4
      %s41 = int_to_ptr.hbm [resolvable:$true] %s40
      %s42 = sshll.u32 [#allocation7], 4
      %s43 = int_to_ptr.vmem [resolvable:$true] %s42
      %45 = dma.hbm_to_vmem [thread:$0]  %s41, 128, %s43, [#allocation6]
    $region13: #{tpu_custom_call.1} parent=1 // pred_fallthru
      _
    // Predicated region
    $region14: #{tpu_custom_call.1} parent=1 // pred_check
      _
    $region15: #{tpu_custom_call.1} parent=1 // pred_check_branch
      %47 = sbr.rel (0) target = $region17
    $region16: #{tpu_custom_call.1} parent=1 // pred_region
      %49 = dma.done [#allocation3], 128
    $region17: #{tpu_custom_call.1} parent=1 // pred_fallthru
      _
    // Predicated region
    $region18: #{tpu_custom_call.1} parent=1 // pred_check
      _
    $region19: #{tpu_custom_call.1} parent=1 // pred_check_branch
      %51 = sbr.rel (0) target = $region21
    $region20: #{tpu_custom_call.1} parent=1 // pred_region
      %53 = dma.done [#allocation6], 8192
    $region21: #{tpu_custom_call.1} parent=1 // pred_fallthru
      _
    // Predicated region
    $region22: #{tpu_custom_call.1} parent=1 // pred_check
      _
    $region23: #{tpu_custom_call.1} parent=1 // pred_check_branch
      %55 = sbr.rel (0) target = $region25
    $region24: #{tpu_custom_call.1} parent=1 // pred_region
      %57 = dma.done [#allocation6], 128
    $region25: #{tpu_custom_call.1} parent=1 // pred_fallthru
      _
    %v58 = vld [vmem:[#allocation2] sm:$0xff]
    %v59 = vld [vmem:[#allocation5] sm:$0xff]
    %v60 = vld [vmem:[#allocation5 + $0x8] sm:$0xff]
    %v61 = vld [vmem:[#allocation7] sm:$0x1]
    %v62 = vperm.slane %v61, 0
    %vm63 = vcmask 130048
    %v65 = vsel %vm63, %v58, 0
    %67 = vmatpush.msra.mxu0 0.0
    %68 = vmatpush.msra.mxu0 0.0
    %69 = vmatpush.msra.mxu0 0.0
    %70 = vmatpush.msra.mxu0 0.0
    %71 = vmatpush.msra.mxu0 0.0
    %72 = vmatpush.msra.mxu0 0.0
    %73 = vmatpush.msra.mxu0 0.0
    %74 = vmatpush.msra.mxu0 0.0
    %75 = vmatpush.msra.mxu0 0.0
    %76 = vmatpush.msra.mxu0 0.0
    %77 = vmatpush.msra.mxu0 0.0
    %78 = vmatpush.msra.mxu0 0.0
    %79 = vmatpush.msra.mxu0 0.0
    %80 = vmatpush.msra.mxu0 0.0
    %81 = vmatpush.msra.mxu0 %v60
    %82 = vmatpush.msra.mxu0 %v59
    %83 = vmatmul.f32.gmra.mxu0 %v65
    %v84 = vpop.f32.mrf.mxu0
    %v85 = vadd.f32 %v62, %v84
    %86 = vdwg.mxu0
    %v87 = vmax.f32 %v85, 0.0
    %s88 = scalar_lea.vmem [#allocation5], 128
    %v89 = vld [vmem:[%s88] sm:$0xff]
    %v90 = vld [vmem:[%s88 + $0x8] sm:$0xff]
    %v91 = vld [vmem:[%s88 + $0x10] sm:$0xff]
    %v92 = vld [vmem:[%s88 + $0x18] sm:$0xff]
    %v93 = vld [vmem:[%s88 + $0x20] sm:$0xff]
    %v94 = vld [vmem:[%s88 + $0x28] sm:$0xff]
    %v95 = vld [vmem:[%s88 + $0x30] sm:$0xff]
    %v96 = vld [vmem:[%s88 + $0x38] sm:$0xff]
    %v97 = vld [vmem:[%s88 + $0x40] sm:$0xff]
    %v98 = vld [vmem:[%s88 + $0x48] sm:$0xff]
    %v99 = vld [vmem:[%s88 + $0x50] sm:$0xff]
    %v100 = vld [vmem:[%s88 + $0x58] sm:$0xff]
    %v101 = vld [vmem:[%s88 + $0x60] sm:$0xff]
    %v102 = vld [vmem:[%s88 + $0x68] sm:$0xff]
    %v103 = vld [vmem:[%s88 + $0x70] sm:$0xff]
    %v104 = vld [vmem:[%s88 + $0x78] sm:$0xff]
    %v105 = vld [vmem:[#allocation7 + $0x1] sm:$0x1]
    %v106 = vperm.slane %v105, 0
    %107 = vmatpush.msra.mxu0 %v104
    %108 = vmatpush.msra.mxu0 %v103
    %109 = vmatpush.msra.mxu0 %v102
    %110 = vmatpush.msra.mxu0 %v101
    %111 = vmatpush.msra.mxu0 %v100
    %112 = vmatpush.msra.mxu0 %v99
    %113 = vmatpush.msra.mxu0 %v98
    %114 = vmatpush.msra.mxu0 %v97
    %115 = vmatpush.msra.mxu0 %v96
    %116 = vmatpush.msra.mxu0 %v95
    %117 = vmatpush.msra.mxu0 %v94
    %118 = vmatpush.msra.mxu0 %v93
    %119 = vmatpush.msra.mxu0 %v92
    %120 = vmatpush.msra.mxu0 %v91
    %121 = vmatpush.msra.mxu0 %v90
    %122 = vmatpush.msra.mxu0 %v89
    %123 = vmatmul.f32.gmra.mxu0 %v87
    %v124 = vpop.f32.mrf.mxu0
    %v125 = vadd.f32 %v106, %v124
    %126 = vdwg.mxu0
    %v127 = vmax.f32 %v125, 0.0
    %s128 = scalar_lea.vmem [#allocation5], 256
    %v129 = vld [vmem:[%s128] sm:$0xff]
    %v130 = vld [vmem:[%s128 + $0x8] sm:$0xff]
    %v131 = vld [vmem:[%s128 + $0x10] sm:$0xff]
    %v132 = vld [vmem:[%s128 + $0x18] sm:$0xff]
    %v133 = vld [vmem:[%s128 + $0x20] sm:$0xff]
    %v134 = vld [vmem:[%s128 + $0x28] sm:$0xff]
    %v135 = vld [vmem:[%s128 + $0x30] sm:$0xff]
    %v136 = vld [vmem:[%s128 + $0x38] sm:$0xff]
    %v137 = vld [vmem:[%s128 + $0x40] sm:$0xff]
    %v138 = vld [vmem:[%s128 + $0x48] sm:$0xff]
    %v139 = vld [vmem:[%s128 + $0x50] sm:$0xff]
    %v140 = vld [vmem:[%s128 + $0x58] sm:$0xff]
    %v141 = vld [vmem:[%s128 + $0x60] sm:$0xff]
    %v142 = vld [vmem:[%s128 + $0x68] sm:$0xff]
    %v143 = vld [vmem:[%s128 + $0x70] sm:$0xff]
    %v144 = vld [vmem:[%s128 + $0x78] sm:$0xff]
    %v145 = vld [vmem:[#allocation7 + $0x2] sm:$0x1]
    %v146 = vperm.slane %v145, 0
    %147 = vmatpush.msra.mxu0 %v144
    %148 = vmatpush.msra.mxu0 %v143
    %149 = vmatpush.msra.mxu0 %v142
    %150 = vmatpush.msra.mxu0 %v141
    %151 = vmatpush.msra.mxu0 %v140
    %152 = vmatpush.msra.mxu0 %v139
    %153 = vmatpush.msra.mxu0 %v138
    %154 = vmatpush.msra.mxu0 %v137
    %155 = vmatpush.msra.mxu0 %v136
    %156 = vmatpush.msra.mxu0 %v135
    %157 = vmatpush.msra.mxu0 %v134
    %158 = vmatpush.msra.mxu0 %v133
    %159 = vmatpush.msra.mxu0 %v132
    %160 = vmatpush.msra.mxu0 %v131
    %161 = vmatpush.msra.mxu0 %v130
    %162 = vmatpush.msra.mxu0 %v129
    %163 = vmatmul.f32.gmra.mxu0 %v127
    %v164 = vpop.f32.mrf.mxu0
    %v165 = vadd.f32 %v146, %v164
    %166 = vdwg.mxu0
    %v167 = vmax.f32 %v165, 0.0
    %s168 = scalar_lea.vmem [#allocation5], 384
    %v169 = vld [vmem:[%s168] sm:$0xff]
    %v170 = vld [vmem:[%s168 + $0x8] sm:$0xff]
    %v171 = vld [vmem:[%s168 + $0x10] sm:$0xff]
    %v172 = vld [vmem:[%s168 + $0x18] sm:$0xff]
    %v173 = vld [vmem:[%s168 + $0x20] sm:$0xff]
    %v174 = vld [vmem:[%s168 + $0x28] sm:$0xff]
    %v175 = vld [vmem:[%s168 + $0x30] sm:$0xff]
    %v176 = vld [vmem:[%s168 + $0x38] sm:$0xff]
    %v177 = vld [vmem:[%s168 + $0x40] sm:$0xff]
    %v178 = vld [vmem:[%s168 + $0x48] sm:$0xff]
    %v179 = vld [vmem:[%s168 + $0x50] sm:$0xff]
    %v180 = vld [vmem:[%s168 + $0x58] sm:$0xff]
    %v181 = vld [vmem:[%s168 + $0x60] sm:$0xff]
    %v182 = vld [vmem:[%s168 + $0x68] sm:$0xff]
    %v183 = vld [vmem:[%s168 + $0x70] sm:$0xff]
    %v184 = vld [vmem:[%s168 + $0x78] sm:$0xff]
    %v185 = vld [vmem:[#allocation7 + $0x3] sm:$0x1]
    %v186 = vperm.slane %v185, 0
    %187 = vmatpush.msra.mxu0 %v184
    %188 = vmatpush.msra.mxu0 %v183
    %189 = vmatpush.msra.mxu0 %v182
    %190 = vmatpush.msra.mxu0 %v181
    %191 = vmatpush.msra.mxu0 %v180
    %192 = vmatpush.msra.mxu0 %v179
    %193 = vmatpush.msra.mxu0 %v178
    %194 = vmatpush.msra.mxu0 %v177
    %195 = vmatpush.msra.mxu0 %v176
    %196 = vmatpush.msra.mxu0 %v175
    %197 = vmatpush.msra.mxu0 %v174
    %198 = vmatpush.msra.mxu0 %v173
    %199 = vmatpush.msra.mxu0 %v172
    %200 = vmatpush.msra.mxu0 %v171
    %201 = vmatpush.msra.mxu0 %v170
    %202 = vmatpush.msra.mxu0 %v169
    %203 = vmatmul.f32.gmra.mxu0 %v167
    %v204 = vpop.f32.mrf.mxu0
    %v205 = vadd.f32 %v186, %v204
    %206 = vdwg.mxu0
    %207 = vst [vmem:[#allocation8] sm:$0xff] %v205
    // Predicated region
    $region26: #{tpu_custom_call.1} parent=1 // pred_check
      _
    $region27: #{tpu_custom_call.1} parent=1 // pred_check_branch
      %209 = sbr.rel (0) target = $region29
    $region28: #{tpu_custom_call.1} parent=1 // pred_region
      %211 = vsyncadd [#allocation4], 0
      %s213 = sshll.u32 [#allocation8], 4
      %s214 = int_to_ptr.vmem [resolvable:$true] %s213
      %s215 = sshll.u32 %s3, 4
      %s216 = int_to_ptr.hbm [resolvable:$true] %s215
      %218 = dma.vmem_to_hbm [thread:$0]  %s214, 128, %s216, [#allocation4]
    $region29: #{tpu_custom_call.1} parent=1 // pred_fallthru
      _
    // Predicated region
    $region30: #{tpu_custom_call.1} parent=1 // pred_check
      _
    $region31: #{tpu_custom_call.1} parent=1 // pred_check_branch
      %220 = sbr.rel (0) target = $region33
    $region32: #{tpu_custom_call.1} parent=1 // pred_region
      %222 = dma.done [#allocation4], 128
    $region33: #{tpu_custom_call.1} parent=1 // pred_fallthru
      _
    %223 = vsyncpa [#allocation3], 1
    %224 = vsyncpa [#allocation6], 1
    %225 = vsyncpa [#allocation4], 1

</llo_original>
